<compile_context>
chip_gen: v5e
topology: v5e:2x2
jax: 0.10.0
libtpu: 0.0.40
codegen_flags: <defaults>
</compile_context>

<pallas_src>
import jax
import jax.numpy as jnp
from jax.experimental import pallas as pl
from jax.experimental.pallas import tpu as pltpu


def _round_up(x, m):
    return ((x + m - 1) // m) * m


def _pick_tile(n128, max_tile=1024):
    """Largest tile in {128..max_tile} whose padded-A blow-up stays <~20%."""
    t = 128
    for cand in (256, 512, 1024):
        if cand > max_tile:
            break
        n_pad = _round_up(n128, cand)
        if n_pad * n_pad <= 1.21 * n128 * n128:  # A work scales with n_pad^2
            t = cand
    return t


def build_gcn_graph(edge_index, num_nodes):
    """One-time per-graph prep: dense (A + I) as int8 and D^{-1/2} (f32).

    Build once and reuse across layers/steps: each O(N^2) pass here costs as
    much HBM traffic as an entire kernel launch's A read.
    """
    n = num_nodes
    src, dst = edge_index[0], edge_index[1]
    # Duplicate edges accumulate (entries > 1), matching non-coalesced GCNConv
    # semantics; int8 is exact for per-edge multiplicities <= 127.
    a_hat = jnp.zeros((n, n), jnp.int32).at[dst, src].add(1)
    a_hat = a_hat + jnp.eye(n, dtype=jnp.int32)
    deg = a_hat.sum(axis=1).astype(jnp.float32)
    d_inv_sqrt = jnp.where(deg > 0, jax.lax.rsqrt(deg), 0.0)
    return a_hat.astype(jnp.int8), d_inv_sqrt


def _make_kernel(apply_w, h_resident, t):
    """Kernel over grid (row-block i, reduction-block k) computing (A H)[W]."""

    def body(a_ref, h_ref, w_ref, o_ref, acc_ref):
        k = pl.program_id(1)

        @pl.when(k == 0)
        def _init():
            acc_ref[...] = jnp.zeros_like(acc_ref)

        # int8 A tile -> bf16 (cheap VPU cast, hidden under DMA/MXU); halves
        # the dominant HBM stream vs. storing A in bf16.
        a = a_ref[...].astype(jnp.bfloat16)
        if h_resident:
            # H is VMEM-resident (one DMA, constant index_map); slice k-tile.
            start = pl.multiple_of(k * t, t)
            h = h_ref[pl.ds(start, t), :]
        else:
            h = h_ref[...]
        acc_ref[...] += jnp.dot(a, h, preferred_element_type=jnp.float32)

        @pl.when(k == pl.num_programs(1) - 1)
        def _finalize():
            acc = acc_ref[...]
            if apply_w:
                # (A X) @ W epilogue (F_in <= F_out). bf16 cast keeps the MXU
                # fast path; loosest numeric point, fine for bf16 workloads.
                acc = jnp.dot(acc.astype(jnp.bfloat16), w_ref[...],
                              preferred_element_type=jnp.float32)
            # Lane-dense store (F_out padded to 128). Left D^{-1/2} and bias
            # are applied in the wrapper on the (N, F_out) output.
            o_ref[...] = acc.astype(o_ref.dtype)

    if apply_w:
        def kernel(a_ref, h_ref, w_ref, o_ref, acc_ref):
            body(a_ref, h_ref, w_ref, o_ref, acc_ref)
    else:
        def kernel(a_ref, h_ref, o_ref, acc_ref):
            body(a_ref, h_ref, None, o_ref, acc_ref)
    return kernel


def gcn_layer(x, edge_index, weight, bias, *, graph=None, max_tile=1024,
              h_resident_budget_bytes=8 << 20):
    """GCNConv forward: out = D^-1/2 (A+I) D^-1/2 X W + b."""
    n, f_in = x.shape
    f_out = weight.shape[1]

    # TODO(synk): for real sparse graphs replace the dense N x N adjacency with
    # CSR neighbor lists via PrefetchScalarGridSpec + gather DMA (O(E*F)).
    if graph is None:
        graph = build_gcn_graph(edge_index, n)
    a_hat_i8, d_inv_sqrt = graph

    # Cheaper association: contract the N x N matrix against min(F_in, F_out).
    apply_w_in_kernel = f_in <= f_out
    if apply_w_in_kernel:
        h = d_inv_sqrt[:, None] * x                    # (N, F_in)   -> (A H) W
    else:
        h = d_inv_sqrt[:, None] * jnp.dot(x, weight)   # (N, F_out)  -> A (X W)
    f_h = h.shape[1]

    # --- tiling / padding: pad N only to 128, pick T adaptively ---
    n128 = _round_up(n, 128)
    t = _pick_tile(n128, max_tile)
    n_pad = _round_up(n128, t)
    while t > 128 and n_pad // t < 2:      # >= 2 row blocks for megacore split
        t //= 2
    fh_pad = _round_up(f_h, 128)
    fo_pad = _round_up(f_out, 128)
    grid = (n_pad // t, n_pad // t)

    a_pad = jnp.zeros((n_pad, n_pad), jnp.int8).at[:n, :n].set(a_hat_i8)
    h_pad = jnp.zeros((n_pad, fh_pad), jnp.bfloat16).at[:n, :f_h].set(
        h.astype(jnp.bfloat16))

    h_bytes = n_pad * fh_pad * 2
    h_resident = h_bytes <= h_resident_budget_bytes

    in_specs = [pl.BlockSpec((t, t), lambda i, k: (i, k))]        # A (streamed, int8)
    operands = [a_pad]
    if h_resident:
        # Whole-array block, constant index_map -> DMA'd once, VMEM-resident.
        in_specs.append(pl.BlockSpec((n_pad, fh_pad), lambda i, k: (0, 0)))
    else:
        in_specs.append(pl.BlockSpec((t, fh_pad), lambda i, k: (k, 0)))
    operands.append(h_pad)
    if apply_w_in_kernel:
        w_pad = jnp.zeros((fh_pad, fo_pad), jnp.bfloat16).at[:f_in, :f_out].set(
            weight.astype(jnp.bfloat16))
        in_specs.append(pl.BlockSpec((fh_pad, fo_pad), lambda i, k: (0, 0)))
        operands.append(w_pad)

    out_itemsize = jnp.dtype(x.dtype).itemsize
    # VMEM estimate (count every BlockSpec'd operand as double-buffered).
    est = 2 * t * t                                               # A, int8
    est += 2 * (h_bytes if h_resident else t * fh_pad * 2)        # H
    est += (2 * fh_pad * fo_pad * 2) if apply_w_in_kernel else 0  # W
    est += t * fh_pad * 4                                         # f32 acc
    est += 2 * t * fo_pad * out_itemsize                          # out block
    vmem_limit = int(min(48 << 20, max(32 << 20, est + (8 << 20))))

    flops = 2 * n_pad * n_pad * fh_pad
    if apply_w_in_kernel:
        flops += 2 * n_pad * fh_pad * fo_pad
    bytes_accessed = (n_pad * n_pad
                      + (1 if h_resident else grid[0]) * h_bytes
                      + ((fh_pad * fo_pad * 2) if apply_w_in_kernel else 0)
                      + n_pad * fo_pad * out_itemsize)

    out = pl.pallas_call(
        _make_kernel(apply_w_in_kernel, h_resident, t),
        out_shape=jax.ShapeDtypeStruct((n_pad, fo_pad), x.dtype),
        grid=grid,
        in_specs=in_specs,
        out_specs=pl.BlockSpec((t, fo_pad), lambda i, k: (i, 0)),
        scratch_shapes=[pltpu.VMEM((t, fh_pad), jnp.float32)],
        compiler_params=pltpu.CompilerParams(
            dimension_semantics=("parallel", "arbitrary"),
            vmem_limit_bytes=vmem_limit),
        cost_estimate=pl.CostEstimate(flops=flops, transcendentals=0,
                                      bytes_accessed=bytes_accessed),
    )(*operands)

    # Left D^{-1/2} row scale + bias on the small (N, F_out) output; keeps the
    # lane-sparse (t, 1) operand out of the kernel entirely.
    result = d_inv_sqrt[:, None] * out[:n, :f_out] + bias[None, :]
    return result.astype(x.dtype)


if __name__ == "__main__":
    key = jax.random.PRNGKey(0)
    k_x, k_w, k_b = jax.random.split(key, 3)

    N, F_IN, F_OUT = 8, 16, 32  # small graph: 8 nodes, 16 -> 32 features

    # Node features
    x = jax.random.normal(k_x, (N, F_IN), dtype=jnp.float32)

    # Undirected ring graph as edge_index [2, E]
    s = jnp.arange(N, dtype=jnp.int32)
    d = (s + 1) % N
    edge_index = jnp.stack(
        [jnp.concatenate([s, d]), jnp.concatenate([d, s])], axis=0)

    # Deterministic parameter init (GCNConv shapes: W [F_in, F_out], b [F_out])
    limit = (6.0 / (F_IN + F_OUT)) ** 0.5  # glorot-uniform
    weight = jax.random.uniform(k_w, (F_IN, F_OUT), jnp.float32, -limit, limit)
    bias = 0.01 * jax.random.normal(k_b, (F_OUT,), dtype=jnp.float32)

    # Build the graph structures once (reusable across layers / steps).
    graph = build_gcn_graph(edge_index, N)

    out = gcn_layer(x, edge_index, weight, bias, graph=graph)
    out = jax.block_until_ready(out)

    # Pure-JAX f32 reference of the same math for a sanity check.
    a_ref = jnp.zeros((N, N), jnp.float32).at[edge_index[1], edge_index[0]].add(1.0)
    a_ref = a_ref + jnp.eye(N, dtype=jnp.float32)
    deg_ref = a_ref.sum(axis=1)
    dis_ref = jnp.where(deg_ref > 0, 1.0 / jnp.sqrt(deg_ref), 0.0)
    a_norm = dis_ref[:, None] * a_ref * dis_ref[None, :]
    ref = a_norm @ (x @ weight) + bias[None, :]

    assert out.shape == (N, F_OUT), out.shape
    assert jnp.all(jnp.isfinite(out))
    assert jnp.allclose(out, ref, atol=1e-1, rtol=1e-1), float(
        jnp.max(jnp.abs(out - ref)))
    print("KERNEL_OK")
</pallas_src>

<mosaic_0001>
module attributes {stable_mosaic.version = 11 : i64} {
  func.func @kernel(%arg0: i32, %arg1: i32, %arg2: memref<128x128xi8, #tpu.memory_space<vmem>>, %arg3: memref<128x128xbf16, #tpu.memory_space<vmem>>, %arg4: memref<128x128xbf16, #tpu.memory_space<vmem>>, %arg5: memref<128x128xf32, #tpu.memory_space<vmem>>, %arg6: memref<128x128xf32, #tpu.memory_space<vmem>>) attributes {dimension_semantics = [#tpu.dimension_semantics<parallel>, #tpu.dimension_semantics<arbitrary>], iteration_bounds = array<i64: 1, 1>, scalar_prefetch = 0 : i64, scratch_operands = 1 : i64, tpu.core_type = #tpu.core_type<tc>, window_params = [{transform_indices = @transform_0, window_bounds = array<i64: 128, 128>}, {pipeline_mode = #tpu.pipeline_mode<synchronous>, transform_indices = @transform_1, window_bounds = array<i64: 128, 128>}, {pipeline_mode = #tpu.pipeline_mode<synchronous>, transform_indices = @transform_2, window_bounds = array<i64: 128, 128>}, {transform_indices = @transform_3, window_bounds = array<i64: 128, 128>}]} {
    %c0_i32 = arith.constant 0 : i32
    %0 = arith.cmpi eq, %arg1, %c0_i32 : i32
    %1 = arith.extui %0 : i1 to i32
    %c0_i32_0 = arith.constant 0 : i32
    %2 = arith.cmpi ne, %1, %c0_i32_0 : i32
    scf.if %2 {
      %cst_9 = arith.constant 0.000000e+00 : f32
      %16 = vector.broadcast %cst_9 : f32 to vector<128x128xf32>
      %c0_10 = arith.constant 0 : index
      %c0_11 = arith.constant 0 : index
      %17 = vector.load %arg6[%c0_10, %c0_11] : memref<128x128xf32, #tpu.memory_space<vmem>>, vector<128x128xf32>
      tpu.vector_store %arg6[%c0_10, %c0_11], %16 {strides = array<i32>} : memref<128x128xf32, #tpu.memory_space<vmem>>, vector<128x128xf32>,
    } else {
    }
    %c0 = arith.constant 0 : index
    %c0_1 = arith.constant 0 : index
    %3 = vector.load %arg2[%c0, %c0_1] : memref<128x128xi8, #tpu.memory_space<vmem>>, vector<128x128xi8>
    %4 = arith.sitofp %3 : vector<128x128xi8> to vector<128x128xbf16>
    %c128_i32 = arith.constant 128 : i32
    %5 = arith.muli %arg1, %c128_i32 : i32
    %6 = tpu.assume_multiple %5, 128 : i32
    %7 = arith.index_cast %6 : i32 to index
    %c0_2 = arith.constant 0 : index
    %8 = vector.load %arg3[%7, %c0_2] : memref<128x128xbf16, #tpu.memory_space<vmem>>, vector<128x128xbf16>
    %c0_3 = arith.constant 0 : index
    %c0_4 = arith.constant 0 : index
    %9 = vector.load %arg6[%c0_3, %c0_4] : memref<128x128xf32, #tpu.memory_space<vmem>>, vector<128x128xf32>
    %cst = arith.constant dense<0.000000e+00> : vector<128x128xf32>
    %10 = tpu.matmul %4, %8, %cst {dimension_numbers = #tpu.dot_dimension_numbers<[1], [0], [0], [1], [0, 0, 1, 1], [], []>} : vector<128x128xbf16>, vector<128x128xbf16>, vector<128x128xf32> -> vector<128x128xf32>
    %11 = arith.addf %9, %10 : vector<128x128xf32>
    %c0_5 = arith.constant 0 : index
    %c0_6 = arith.constant 0 : index
    %12 = vector.load %arg6[%c0_5, %c0_6] : memref<128x128xf32, #tpu.memory_space<vmem>>, vector<128x128xf32>
    tpu.vector_store %arg6[%c0_5, %c0_6], %11 {strides = array<i32>} : memref<128x128xf32, #tpu.memory_space<vmem>>, vector<128x128xf32>,
    %c0_i32_7 = arith.constant 0 : i32
    %13 = arith.cmpi eq, %arg1, %c0_i32_7 : i32
    %14 = arith.extui %13 : i1 to i32
    %c0_i32_8 = arith.constant 0 : i32
    %15 = arith.cmpi ne, %14, %c0_i32_8 : i32
    scf.if %15 {
      %c0_9 = arith.constant 0 : index
      %c0_10 = arith.constant 0 : index
      %16 = vector.load %arg6[%c0_9, %c0_10] : memref<128x128xf32, #tpu.memory_space<vmem>>, vector<128x128xf32>
      %17 = arith.truncf %16 : vector<128x128xf32> to vector<128x128xbf16>
      %c0_11 = arith.constant 0 : index
      %c0_12 = arith.constant 0 : index
      %18 = vector.load %arg4[%c0_11, %c0_12] : memref<128x128xbf16, #tpu.memory_space<vmem>>, vector<128x128xbf16>
      %cst_13 = arith.constant dense<0.000000e+00> : vector<128x128xf32>
      %19 = tpu.matmul %17, %18, %cst_13 {dimension_numbers = #tpu.dot_dimension_numbers<[1], [0], [0], [1], [0, 0, 1, 1], [], []>} : vector<128x128xbf16>, vector<128x128xbf16>, vector<128x128xf32> -> vector<128x128xf32>
      %c0_14 = arith.constant 0 : index
      %c0_15 = arith.constant 0 : index
      %20 = vector.load %arg5[%c0_14, %c0_15] : memref<128x128xf32, #tpu.memory_space<vmem>>, vector<128x128xf32>
      tpu.vector_store %arg5[%c0_14, %c0_15], %19 {strides = array<i32>} : memref<128x128xf32, #tpu.memory_space<vmem>>, vector<128x128xf32>,
    } else {
    }
    return
  }
  func.func @transform_0(%arg0: i32, %arg1: i32) -> (i32, i32) {
    %c0_i32 = arith.constant 0 : i32
    return %arg0, %arg1 : i32, i32
  }
  func.func @transform_1(%arg0: i32, %arg1: i32) -> (i32, i32) {
    %c0_i32 = arith.constant 0 : i32
    %c0_i32_0 = arith.constant 0 : i32
    %c0_i32_1 = arith.constant 0 : i32
    return %c0_i32, %c0_i32_0 : i32, i32
  }
  func.func @transform_2(%arg0: i32, %arg1: i32) -> (i32, i32) {
    %c0_i32 = arith.constant 0 : i32
    %c0_i32_0 = arith.constant 0 : i32
    %c0_i32_1 = arith.constant 0 : i32
    return %c0_i32, %c0_i32_0 : i32, i32
  }
  func.func @transform_3(%arg0: i32, %arg1: i32) -> (i32, i32) {
    %c0_i32 = arith.constant 0 : i32
    %c0_i32_0 = arith.constant 0 : i32
    return %arg0, %c0_i32 : i32, i32
  }
}

</mosaic_0001>

<llo_original>
// kernel: tpu_custom_call.1
$region0: #{tpu_custom_call.1}
  #allocation0 [shape = 'u32[]', space=smem, size = 0x4, offset = 0x4, fixed_abs, tag = 'smem constant byte address 0x4 - core index']
  #allocation1 [shape = 'u32[72,128]{1,0:T(1,128)}', space=vmem, size = 0x9000, scoped, tag = 'internal scratch']
  #allocation2 [shape = 'f32[128,128]{1,0:T(8,128)}', space=vmem, size = 0x10000, scoped, tag = 'scratch operand']
  %s0 = inlined_call_operand.hbm [shape: s8[128,128], index: 0, kind: input, shape index: {}]
  %s1 = inlined_call_operand.hbm [shape: bf16[128,128], index: 1, kind: input, shape index: {}]
  %s2 = inlined_call_operand.hbm [shape: bf16[128,128], index: 2, kind: input, shape index: {}]
  %s3 = inlined_call_operand.hbm [shape: f32[128,128], index: 3, kind: output, shape index: {}]
  %s4 = sld [smem:[#allocation0]]
  $region42: #{tpu_custom_call.1} parent=0
    _
  %s6 = ssub.s32 1, %s4
  %s7 = scalar_select 0, %s6, %s4
  $region1: #{tpu_custom_call.1} parent=0
    #allocation3 [shape = 'u8[16384]{0}', space=vmem, size = 0x4000, scoped, tag = 'input window, operand 0, single buffered']
    #allocation4 [shape = 's32[1]{0}', space=sflag, size = 0x4, scoped, tag = 'scoped memory for tpu_custom_call.1']
    #allocation5 [shape = 's32[1]{0}', space=sflag, size = 0x4, scoped, tag = 'scoped memory for tpu_custom_call.1']
    #allocation6 [shape = 'u8[32768]{0}', space=vmem, size = 0x8000, scoped, tag = 'input window, operand 1, single buffered']
    #allocation7 [shape = 's32[1]{0}', space=sflag, size = 0x4, scoped, tag = 'scoped memory for tpu_custom_call.1']
    #allocation8 [shape = 'u8[32768]{0}', space=vmem, size = 0x8000, scoped, tag = 'input window, operand 2, single buffered']
    #allocation9 [shape = 'u8[65536]{0}', space=vmem, size = 0x10000, scoped, tag = 'output window, operand 0, single buffered']
    %8 = vsyncpa [#allocation4], 0
    %9 = vsyncpa [#allocation7], 0
    %10 = vsyncpa [#allocation5], 0
    // Predicated region
    $region2: #{tpu_custom_call.1} parent=1 // pred_check
      _
    $region3: #{tpu_custom_call.1} parent=1 // pred_check_branch
      %12 = sbr.rel (0) target = $region5
    $region4: #{tpu_custom_call.1} parent=1 // pred_region
      %14 = vsyncadd [#allocation4], 0
      %s15 = sshll.u32 %s0, 4
      %s16 = int_to_ptr.hbm [resolvable:$true] %s15
      %s17 = sshll.u32 [#allocation3], 4
      %s18 = int_to_ptr.vmem [resolvable:$true] %s17
      %23 = dma.hbm_to_vmem [thread:$0]  %s16, 512, %s18, [#allocation4], 128, 128, 8
    $region5: #{tpu_custom_call.1} parent=1 // pred_fallthru
      _
    // Predicated region
    $region6: #{tpu_custom_call.1} parent=1 // pred_check
      _
    $region7: #{tpu_custom_call.1} parent=1 // pred_check_branch
      %25 = sbr.rel (0) target = $region9
    $region8: #{tpu_custom_call.1} parent=1 // pred_region
      %27 = vsyncadd [#allocation7], 0
      %s28 = sshll.u32 %s1, 4
      %s29 = int_to_ptr.hbm [resolvable:$true] %s28
      %s30 = sshll.u32 [#allocation6], 4
      %s31 = int_to_ptr.vmem [resolvable:$true] %s30
      %36 = dma.hbm_to_vmem [thread:$0]  %s29, 1024, %s31, [#allocation7], 64, 64, 4
    $region9: #{tpu_custom_call.1} parent=1 // pred_fallthru
      _
    // Predicated region
    $region10: #{tpu_custom_call.1} parent=1 // pred_check
      _
    $region11: #{tpu_custom_call.1} parent=1 // pred_check_branch
      %38 = sbr.rel (0) target = $region13
    $region12: #{tpu_custom_call.1} parent=1 // pred_region
      %40 = vsyncadd [#allocation7], 0
      %s41 = sshll.u32 %s2, 4
      %s42 = int_to_ptr.hbm [resolvable:$true] %s41
      %s43 = sshll.u32 [#allocation8], 4
      %s44 = int_to_ptr.vmem [resolvable:$true] %s43
      %49 = dma.hbm_to_vmem [thread:$0]  %s42, 1024, %s44, [#allocation7], 64, 64, 4
    $region13: #{tpu_custom_call.1} parent=1 // pred_fallthru
      _
    // Predicated region
    $region14: #{tpu_custom_call.1} parent=1 // pred_check
      _
    $region15: #{tpu_custom_call.1} parent=1 // pred_check_branch
      %51 = sbr.rel (0) target = $region17
    $region16: #{tpu_custom_call.1} parent=1 // pred_region
      %53 = dma.done [#allocation4], 512
    $region17: #{tpu_custom_call.1} parent=1 // pred_fallthru
      _
    // Predicated region
    $region18: #{tpu_custom_call.1} parent=1 // pred_check
      _
    $region19: #{tpu_custom_call.1} parent=1 // pred_check_branch
      %55 = sbr.rel (0) target = $region21
    $region20: #{tpu_custom_call.1} parent=1 // pred_region
      %57 = dma.done [#allocation7], 1024
    $region21: #{tpu_custom_call.1} parent=1 // pred_fallthru
      _
    // Predicated region
    $region22: #{tpu_custom_call.1} parent=1 // pred_check
      _
    $region23: #{tpu_custom_call.1} parent=1 // pred_check_branch
      %59 = sbr.rel (0) target = $region25
    $region24: #{tpu_custom_call.1} parent=1 // pred_region
      %61 = dma.done [#allocation7], 1024
    $region25: #{tpu_custom_call.1} parent=1 // pred_fallthru
      _
    %p62 = scmp.eq.s32.totalorder 0, 0
    // Predicated region
    $region26: #{tpu_custom_call.1} parent=1 // pred_check
      %p63 = pneg %p62
    $region27: #{tpu_custom_call.1} parent=1 // pred_check_branch
      %65 = sbr.rel (%p63) target = $region29
    $region28: #{tpu_custom_call.1} parent=1 // pred_region
      %66 = vst [vmem:[#allocation2] sm:$0xff] 0.0
      %67 = vst [vmem:[#allocation2 + $0x8] sm:$0xff] 0.0
      %68 = vst [vmem:[#allocation2 + $0x10] sm:$0xff] 0.0
      %69 = vst [vmem:[#allocation2 + $0x18] sm:$0xff] 0.0
      %70 = vst [vmem:[#allocation2 + $0x20] sm:$0xff] 0.0
      %71 = vst [vmem:[#allocation2 + $0x28] sm:$0xff] 0.0
      %72 = vst [vmem:[#allocation2 + $0x30] sm:$0xff] 0.0
      %73 = vst [vmem:[#allocation2 + $0x38] sm:$0xff] 0.0
      %74 = vst [vmem:[#allocation2 + $0x40] sm:$0xff] 0.0
      %75 = vst [vmem:[#allocation2 + $0x48] sm:$0xff] 0.0
      %76 = vst [vmem:[#allocation2 + $0x50] sm:$0xff] 0.0
      %77 = vst [vmem:[#allocation2 + $0x58] sm:$0xff] 0.0
      %78 = vst [vmem:[#allocation2 + $0x60] sm:$0xff] 0.0
      %79 = vst [vmem:[#allocation2 + $0x68] sm:$0xff] 0.0
      %80 = vst [vmem:[#allocation2 + $0x70] sm:$0xff] 0.0
      %81 = vst [vmem:[#allocation2 + $0x78] sm:$0xff] 0.0
    $region29: #{tpu_custom_call.1} parent=1 // pred_fallthru
      _
    %v82 = vld [vmem:[#allocation3] sm:$0xff]
    %v83 = vld [vmem:[#allocation3 + $0x8] sm:$0xff]
    %v84 = vld [vmem:[#allocation3 + $0x10] sm:$0xff]
    %v85 = vld [vmem:[#allocation3 + $0x18] sm:$0xff]
    %v86 = vunpack.c.0.s8 %v82
    %v87 = vunpack.c.1.s8 %v82
    %v88 = vunpack.c.2.s8 %v82
    %v89 = vunpack.c.3.s8 %v82
    %v90 = vunpack.c.0.s8 %v83
    %v91 = vunpack.c.1.s8 %v83
    %v92 = vunpack.c.2.s8 %v83
    %v93 = vunpack.c.3.s8 %v83
    %v94 = vunpack.c.0.s8 %v84
    %v95 = vunpack.c.1.s8 %v84
    %v96 = vunpack.c.2.s8 %v84
    %v97 = vunpack.c.3.s8 %v84
    %v98 = vunpack.c.0.s8 %v85
    %v99 = vunpack.c.1.s8 %v85
    %v100 = vunpack.c.2.s8 %v85
    %v101 = vunpack.c.3.s8 %v85
    %v102 = vcvt.s32.f32 %v86
    %v103 = vcvt.s32.f32 %v87
    %v104 = vcvt.s32.f32 %v88
    %v105 = vcvt.s32.f32 %v89
    %v106 = vcvt.s32.f32 %v90
    %v107 = vcvt.s32.f32 %v91
    %v108 = vcvt.s32.f32 %v92
    %v109 = vcvt.s32.f32 %v93
    %v110 = vcvt.s32.f32 %v94
    %v111 = vcvt.s32.f32 %v95
    %v112 = vcvt.s32.f32 %v96
    %v113 = vcvt.s32.f32 %v97
    %v114 = vcvt.s32.f32 %v98
    %v115 = vcvt.s32.f32 %v99
    %v116 = vcvt.s32.f32 %v100
    %v117 = vcvt.s32.f32 %v101
    %v118 = vpack.c.bf16 %v103, %v102
    %v119 = vpack.c.bf16 %v105, %v104
    %v120 = vpack.c.bf16 %v107, %v106
    %v121 = vpack.c.bf16 %v109, %v108
    %v122 = vpack.c.bf16 %v111, %v110
    %v123 = vpack.c.bf16 %v113, %v112
    %v124 = vpack.c.bf16 %v115, %v114
    %v125 = vpack.c.bf16 %v117, %v116
    %s126 = smul.u32 0, 128
    %s127 = sshra.s32 %s126, 3
    %s128 = sand.u32 %s126, 7
    %s129 = smul.addr %s127, 4
    %s130 = scalar_lea.vmem [#allocation6], %s129
    %v131 = vld [vmem:[%s130] sm:$0xf]
    %v132 = vld [vmem:[%s130 + $0x4] sm:$0xf]
    %v133 = vld [vmem:[%s130 + $0x8] sm:$0xf]
    %v134 = vld [vmem:[%s130 + $0xc] sm:$0xf]
    %v135 = vld [vmem:[%s130 + $0x10] sm:$0xf]
    %v136 = vld [vmem:[%s130 + $0x14] sm:$0xf]
    %v137 = vld [vmem:[%s130 + $0x18] sm:$0xf]
    %v138 = vld [vmem:[%s130 + $0x1c] sm:$0xf]
    %v139 = vld [vmem:[%s130 + $0x20] sm:$0xf]
    %v140 = vld [vmem:[%s130 + $0x24] sm:$0xf]
    %v141 = vld [vmem:[%s130 + $0x28] sm:$0xf]
    %v142 = vld [vmem:[%s130 + $0x2c] sm:$0xf]
    %v143 = vld [vmem:[%s130 + $0x30] sm:$0xf]
    %v144 = vld [vmem:[%s130 + $0x34] sm:$0xf]
    %v145 = vld [vmem:[%s130 + $0x38] sm:$0xf]
    %v146 = vld [vmem:[%s130 + $0x3c] sm:$0xf]
    %v147 = vld [vmem:[#allocation2] sm:$0xff]
    %v148 = vld [vmem:[#allocation2 + $0x8] sm:$0xff]
    %v149 = vld [vmem:[#allocation2 + $0x10] sm:$0xff]
    %v150 = vld [vmem:[#allocation2 + $0x18] sm:$0xff]
    %v151 = vld [vmem:[#allocation2 + $0x20] sm:$0xff]
    %v152 = vld [vmem:[#allocation2 + $0x28] sm:$0xff]
    %v153 = vld [vmem:[#allocation2 + $0x30] sm:$0xff]
    %v154 = vld [vmem:[#allocation2 + $0x38] sm:$0xff]
    %v155 = vld [vmem:[#allocation2 + $0x40] sm:$0xff]
    %v156 = vld [vmem:[#allocation2 + $0x48] sm:$0xff]
    %v157 = vld [vmem:[#allocation2 + $0x50] sm:$0xff]
    %v158 = vld [vmem:[#allocation2 + $0x58] sm:$0xff]
    %v159 = vld [vmem:[#allocation2 + $0x60] sm:$0xff]
    %v160 = vld [vmem:[#allocation2 + $0x68] sm:$0xff]
    %v161 = vld [vmem:[#allocation2 + $0x70] sm:$0xff]
    %v162 = vld [vmem:[#allocation2 + $0x78] sm:$0xff]
    %v179 = vunpack.c.l.b16 %v131
    %v180 = vunpack.c.l.b16 %v132
    %v181 = vunpack.c.l.b16 %v133
    %v182 = vunpack.c.l.b16 %v134
    %v183 = vunpack.c.l.b16 %v135
    %v184 = vunpack.c.l.b16 %v136
    %v185 = vunpack.c.l.b16 %v137
    %v186 = vunpack.c.l.b16 %v138
    %v187 = vunpack.c.l.b16 %v139
    %v188 = vunpack.c.l.b16 %v140
    %v189 = vunpack.c.l.b16 %v141
    %v190 = vunpack.c.l.b16 %v142
    %v191 = vunpack.c.l.b16 %v143
    %v192 = vunpack.c.l.b16 %v144
    %v193 = vunpack.c.l.b16 %v145
    %v194 = vunpack.c.l.b16 %v146
    %v195 = vpack.c.b16 %v180, %v179
    %v196 = vpack.c.b16 %v182, %v181
    %v197 = vpack.c.b16 %v184, %v183
    %v198 = vpack.c.b16 %v186, %v185
    %v199 = vpack.c.b16 %v188, %v187
    %v200 = vpack.c.b16 %v190, %v189
    %v201 = vpack.c.b16 %v192, %v191
    %v202 = vpack.c.b16 %v194, %v193
    %211 = vmatpush.bf16.msra.mxu0 %v202
    %212 = vmatpush.bf16.msra.mxu0 %v201
    %213 = vmatpush.bf16.msra.mxu0 %v200
    %214 = vmatpush.bf16.msra.mxu0 %v199
    %215 = vmatpush.bf16.msra.mxu0 %v198
    %216 = vmatpush.bf16.msra.mxu0 %v197
    %217 = vmatpush.bf16.msra.mxu0 %v196
    %218 = vmatpush.bf16.msra.mxu0 %v195
    %219 = vmatmul.bf16.gmra.mxu0 %v118
    %v220 = vpop.f32.mrf.mxu0
    %v221 = vadd.f32 0.0, %v220
    %v222 = vpop.f32.mrf.mxu0
    %v223 = vadd.f32 0.0, %v222
    %224 = vmatmul.bf16.gmra.mxu0 %v119
    %v225 = vpop.f32.mrf.mxu0
    %v226 = vadd.f32 0.0, %v225
    %v227 = vpop.f32.mrf.mxu0
    %v228 = vadd.f32 0.0, %v227
    %229 = vmatmul.bf16.gmra.mxu0 %v120
    %v230 = vpop.f32.mrf.mxu0
    %v231 = vadd.f32 0.0, %v230
    %v232 = vpop.f32.mrf.mxu0
    %v233 = vadd.f32 0.0, %v232
    %234 = vmatmul.bf16.gmra.mxu0 %v121
    %v235 = vpop.f32.mrf.mxu0
    %v236 = vadd.f32 0.0, %v235
    %v237 = vpop.f32.mrf.mxu0
    %v238 = vadd.f32 0.0, %v237
    %239 = vmatmul.bf16.gmra.mxu0 %v122
    %v240 = vpop.f32.mrf.mxu0
    %v241 = vadd.f32 0.0, %v240
    %v242 = vpop.f32.mrf.mxu0
    %v243 = vadd.f32 0.0, %v242
    %244 = vmatmul.bf16.gmra.mxu0 %v123
    %v245 = vpop.f32.mrf.mxu0
    %v246 = vadd.f32 0.0, %v245
    %v247 = vpop.f32.mrf.mxu0
    %v248 = vadd.f32 0.0, %v247
    %249 = vmatmul.bf16.gmra.mxu0 %v124
    %v250 = vpop.f32.mrf.mxu0
    %v251 = vadd.f32 0.0, %v250
    %v252 = vpop.f32.mrf.mxu0
    %v253 = vadd.f32 0.0, %v252
    %254 = vmatmul.bf16.gmra.mxu0 %v125
    %v255 = vpop.f32.mrf.mxu0
    %v256 = vadd.f32 0.0, %v255
    %v257 = vpop.f32.mrf.mxu0
    %v258 = vadd.f32 0.0, %v257
    %259 = vdwg.mxu0
    %v260 = vadd.f32 %v147, %v221
    %v261 = vadd.f32 %v148, %v223
    %v262 = vadd.f32 %v149, %v226
    %v263 = vadd.f32 %v150, %v228
    %v264 = vadd.f32 %v151, %v231
    %v265 = vadd.f32 %v152, %v233
    %v266 = vadd.f32 %v153, %v236
    %v267 = vadd.f32 %v154, %v238
    %v268 = vadd.f32 %v155, %v241
    %v269 = vadd.f32 %v156, %v243
    %v270 = vadd.f32 %v157, %v246
    %v271 = vadd.f32 %v158, %v248
    %v272 = vadd.f32 %v159, %v251
    %v273 = vadd.f32 %v160, %v253
    %v274 = vadd.f32 %v161, %v256
    %v275 = vadd.f32 %v162, %v258
    %276 = vst [vmem:[#allocation2] sm:$0xff] %v260
    %277 = vst [vmem:[#allocation2 + $0x8] sm:$0xff] %v261
    %278 = vst [vmem:[#allocation2 + $0x10] sm:$0xff] %v262
    %279 = vst [vmem:[#allocation2 + $0x18] sm:$0xff] %v263
    %280 = vst [vmem:[#allocation2 + $0x20] sm:$0xff] %v264
    %281 = vst [vmem:[#allocation2 + $0x28] sm:$0xff] %v265
    %282 = vst [vmem:[#allocation2 + $0x30] sm:$0xff] %v266
    %283 = vst [vmem:[#allocation2 + $0x38] sm:$0xff] %v267
    %284 = vst [vmem:[#allocation2 + $0x40] sm:$0xff] %v268
    %285 = vst [vmem:[#allocation2 + $0x48] sm:$0xff] %v269
    %286 = vst [vmem:[#allocation2 + $0x50] sm:$0xff] %v270
    %287 = vst [vmem:[#allocation2 + $0x58] sm:$0xff] %v271
    %288 = vst [vmem:[#allocation2 + $0x60] sm:$0xff] %v272
    %289 = vst [vmem:[#allocation2 + $0x68] sm:$0xff] %v273
    %290 = vst [vmem:[#allocation2 + $0x70] sm:$0xff] %v274
    %291 = vst [vmem:[#allocation2 + $0x78] sm:$0xff] %v275
    // Predicated region
    $region30: #{tpu_custom_call.1} parent=1 // pred_check
      %p292 = pneg %p62
    $region31: #{tpu_custom_call.1} parent=1 // pred_check_branch
      %294 = sbr.rel (%p292) target = $region33
    $region32: #{tpu_custom_call.1} parent=1 // pred_region
      %v295 = vld [vmem:[#allocation2] sm:$0xff]
      %v296 = vld [vmem:[#allocation2 + $0x8] sm:$0xff]
      %v297 = vld [vmem:[#allocation2 + $0x10] sm:$0xff]
      %v298 = vld [vmem:[#allocation2 + $0x18] sm:$0xff]
      %v299 = vld [vmem:[#allocation2 + $0x20] sm:$0xff]
      %v300 = vld [vmem:[#allocation2 + $0x28] sm:$0xff]
      %v301 = vld [vmem:[#allocation2 + $0x30] sm:$0xff]
      %v302 = vld [vmem:[#allocation2 + $0x38] sm:$0xff]
      %v303 = vld [vmem:[#allocation2 + $0x40] sm:$0xff]
      %v304 = vld [vmem:[#allocation2 + $0x48] sm:$0xff]
      %v305 = vld [vmem:[#allocation2 + $0x50] sm:$0xff]
      %v306 = vld [vmem:[#allocation2 + $0x58] sm:$0xff]
      %v307 = vld [vmem:[#allocation2 + $0x60] sm:$0xff]
      %v308 = vld [vmem:[#allocation2 + $0x68] sm:$0xff]
      %v309 = vld [vmem:[#allocation2 + $0x70] sm:$0xff]
      %v310 = vld [vmem:[#allocation2 + $0x78] sm:$0xff]
      %v311 = vpack.c.bf16 %v296, %v295
      %v312 = vpack.c.bf16 %v298, %v297
      %v313 = vpack.c.bf16 %v300, %v299
      %v314 = vpack.c.bf16 %v302, %v301
      %v315 = vpack.c.bf16 %v304, %v303
      %v316 = vpack.c.bf16 %v306, %v305
      %v317 = vpack.c.bf16 %v308, %v307
      %v318 = vpack.c.bf16 %v310, %v309
      %v319 = vld [vmem:[#allocation8] sm:$0xf]
      %v320 = vld [vmem:[#allocation8 + $0x4] sm:$0xf]
      %v321 = vld [vmem:[#allocation8 + $0x8] sm:$0xf]
      %v322 = vld [vmem:[#allocation8 + $0xc] sm:$0xf]
      %v323 = vld [vmem:[#allocation8 + $0x10] sm:$0xf]
      %v324 = vld [vmem:[#allocation8 + $0x14] sm:$0xf]
      %v325 = vld [vmem:[#allocation8 + $0x18] sm:$0xf]
      %v326 = vld [vmem:[#allocation8 + $0x1c] sm:$0xf]
      %v327 = vld [vmem:[#allocation8 + $0x20] sm:$0xf]
      %v328 = vld [vmem:[#allocation8 + $0x24] sm:$0xf]
      %v329 = vld [vmem:[#allocation8 + $0x28] sm:$0xf]
      %v330 = vld [vmem:[#allocation8 + $0x2c] sm:$0xf]
      %v331 = vld [vmem:[#allocation8 + $0x30] sm:$0xf]
      %v332 = vld [vmem:[#allocation8 + $0x34] sm:$0xf]
      %v333 = vld [vmem:[#allocation8 + $0x38] sm:$0xf]
      %v334 = vld [vmem:[#allocation8 + $0x3c] sm:$0xf]
      %v351 = vunpack.c.l.b16 %v319
      %v352 = vunpack.c.l.b16 %v320
      %v353 = vunpack.c.l.b16 %v321
      %v354 = vunpack.c.l.b16 %v322
      %v355 = vunpack.c.l.b16 %v323
      %v356 = vunpack.c.l.b16 %v324
      %v357 = vunpack.c.l.b16 %v325
      %v358 = vunpack.c.l.b16 %v326
      %v359 = vunpack.c.l.b16 %v327
      %v360 = vunpack.c.l.b16 %v328
      %v361 = vunpack.c.l.b16 %v329
      %v362 = vunpack.c.l.b16 %v330
      %v363 = vunpack.c.l.b16 %v331
      %v364 = vunpack.c.l.b16 %v332
      %v365 = vunpack.c.l.b16 %v333
      %v366 = vunpack.c.l.b16 %v334
      %v367 = vpack.c.b16 %v352, %v351
      %v368 = vpack.c.b16 %v354, %v353
      %v369 = vpack.c.b16 %v356, %v355
      %v370 = vpack.c.b16 %v358, %v357
      %v371 = vpack.c.b16 %v360, %v359
      %v372 = vpack.c.b16 %v362, %v361
      %v373 = vpack.c.b16 %v364, %v363
      %v374 = vpack.c.b16 %v366, %v365
      %383 = vmatpush.bf16.msra.mxu0 %v374
      %384 = vmatpush.bf16.msra.mxu0 %v373
      %385 = vmatpush.bf16.msra.mxu0 %v372
      %386 = vmatpush.bf16.msra.mxu0 %v371
      %387 = vmatpush.bf16.msra.mxu0 %v370
      %388 = vmatpush.bf16.msra.mxu0 %v369
      %389 = vmatpush.bf16.msra.mxu0 %v368
      %390 = vmatpush.bf16.msra.mxu0 %v367
      %391 = vmatmul.bf16.gmra.mxu0 %v311
      %v392 = vpop.f32.mrf.mxu0
      %v393 = vadd.f32 0.0, %v392
      %v394 = vpop.f32.mrf.mxu0
      %v395 = vadd.f32 0.0, %v394
      %396 = vmatmul.bf16.gmra.mxu0 %v312
      %v397 = vpop.f32.mrf.mxu0
      %v398 = vadd.f32 0.0, %v397
      %v399 = vpop.f32.mrf.mxu0
      %v400 = vadd.f32 0.0, %v399
      %401 = vmatmul.bf16.gmra.mxu0 %v313
      %v402 = vpop.f32.mrf.mxu0
      %v403 = vadd.f32 0.0, %v402
      %v404 = vpop.f32.mrf.mxu0
      %v405 = vadd.f32 0.0, %v404
      %406 = vmatmul.bf16.gmra.mxu0 %v314
      %v407 = vpop.f32.mrf.mxu0
      %v408 = vadd.f32 0.0, %v407
      %v409 = vpop.f32.mrf.mxu0
      %v410 = vadd.f32 0.0, %v409
      %411 = vmatmul.bf16.gmra.mxu0 %v315
      %v412 = vpop.f32.mrf.mxu0
      %v413 = vadd.f32 0.0, %v412
      %v414 = vpop.f32.mrf.mxu0
      %v415 = vadd.f32 0.0, %v414
      %416 = vmatmul.bf16.gmra.mxu0 %v316
      %v417 = vpop.f32.mrf.mxu0
      %v418 = vadd.f32 0.0, %v417
      %v419 = vpop.f32.mrf.mxu0
      %v420 = vadd.f32 0.0, %v419
      %421 = vmatmul.bf16.gmra.mxu0 %v317
      %v422 = vpop.f32.mrf.mxu0
      %v423 = vadd.f32 0.0, %v422
      %v424 = vpop.f32.mrf.mxu0
      %v425 = vadd.f32 0.0, %v424
      %426 = vmatmul.bf16.gmra.mxu0 %v318
      %v427 = vpop.f32.mrf.mxu0
      %v428 = vadd.f32 0.0, %v427
      %v429 = vpop.f32.mrf.mxu0
      %v430 = vadd.f32 0.0, %v429
      %431 = vdwg.mxu0
      %432 = vst [vmem:[#allocation9] sm:$0xff] %v393
      %433 = vst [vmem:[#allocation9 + $0x8] sm:$0xff] %v395
      %434 = vst [vmem:[#allocation9 + $0x10] sm:$0xff] %v398
      %435 = vst [vmem:[#allocation9 + $0x18] sm:$0xff] %v400
      %436 = vst [vmem:[#allocation9 + $0x20] sm:$0xff] %v403
      %437 = vst [vmem:[#allocation9 + $0x28] sm:$0xff] %v405
      %438 = vst [vmem:[#allocation9 + $0x30] sm:$0xff] %v408
      %439 = vst [vmem:[#allocation9 + $0x38] sm:$0xff] %v410
      %440 = vst [vmem:[#allocation9 + $0x40] sm:$0xff] %v413
      %441 = vst [vmem:[#allocation9 + $0x48] sm:$0xff] %v415
      %442 = vst [vmem:[#allocation9 + $0x50] sm:$0xff] %v418
      %443 = vst [vmem:[#allocation9 + $0x58] sm:$0xff] %v420
      %444 = vst [vmem:[#allocation9 + $0x60] sm:$0xff] %v423
      %445 = vst [vmem:[#allocation9 + $0x68] sm:$0xff] %v425
      %446 = vst [vmem:[#allocation9 + $0x70] sm:$0xff] %v428
      %447 = vst [vmem:[#allocation9 + $0x78] sm:$0xff] %v430
    $region33: #{tpu_custom_call.1} parent=1 // pred_fallthru
      _
    // Predicated region
    $region34: #{tpu_custom_call.1} parent=1 // pred_check
      _
    $region35: #{tpu_custom_call.1} parent=1 // pred_check_branch
      %449 = sbr.rel (0) target = $region37
    $region36: #{tpu_custom_call.1} parent=1 // pred_region
      %451 = vsyncadd [#allocation5], 0
      %s452 = sshll.u32 [#allocation9], 4
      %s453 = int_to_ptr.vmem [resolvable:$true] %s452
      %s454 = sshll.u32 %s3, 4
      %s455 = int_to_ptr.hbm [resolvable:$true] %s454
      %460 = dma.vmem_to_hbm [thread:$0]  %s453, 2048, %s455, [#allocation5], 128, 128, 8
    $region37: #{tpu_custom_call.1} parent=1 // pred_fallthru
      _
    // Predicated region
    $region38: #{tpu_custom_call.1} parent=1 // pred_check
      _
    $region39: #{tpu_custom_call.1} parent=1 // pred_check_branch
      %462 = sbr.rel (0) target = $region41
    $region40: #{tpu_custom_call.1} parent=1 // pred_region
      %464 = dma.done [#allocation5], 2048
    $region41: #{tpu_custom_call.1} parent=1 // pred_fallthru
      _
    %465 = vsyncpa [#allocation4], 1
    %466 = vsyncpa [#allocation7], 1
    %467 = vsyncpa [#allocation5], 1

</llo_original>
